<compile_context>
chip_gen: v7x
topology: tpu7x:2x2x1
jax: 0.10.0
libtpu: 0.0.40
codegen_flags: <defaults>
</compile_context>

<pallas_src>
import functools

import jax
import jax.numpy as jnp
from jax import lax
from jax.experimental import pallas as pl
from jax.experimental.pallas import tpu as pltpu

_C_PAD = 16  # channel dim (3) zero-padded to 16: sublane-aligned bf16 layer-1 contraction


def _encoder_kernel(x_ref,
                    w1_ref, w2_ref, w3_ref, w4_ref, w5_ref,
                    t1_ref, t2_ref, t3_ref, t4_ref, t5_ref,
                    out_ref, *, fold_b, fold_n):
    # x_ref: (1, _C_PAD, tile_n) bf16, lane-dense point axis (NCW kept, no host transpose
    # needed for the tiled path).
    x = x_ref[0]                                            # (_C_PAD, tile_n) bf16

    # Layer 1: contract the (padded) channel axis -> (tile_n, 64), f32 accumulation.
    h = lax.dot_general(
        x, w1_ref[...],
        dimension_numbers=(((0,), (0,)), ((), ())),
        preferred_element_type=jnp.float32)
    h = jnp.maximum(h + t1_ref[...], 0.0).astype(jnp.bfloat16)   # BN shift + ReLU -> bf16

    def layer(h, w_ref, t_ref, out_dtype):
        y = jnp.dot(h, w_ref[...], preferred_element_type=jnp.float32)
        return jnp.maximum(y + t_ref[...], 0.0).astype(out_dtype)

    h = layer(h, w2_ref, t2_ref, jnp.bfloat16)              # (tile_n, 64)
    h = layer(h, w3_ref, t3_ref, jnp.bfloat16)              # (tile_n, 64)
    h = layer(h, w4_ref, t4_ref, jnp.bfloat16)              # (tile_n, 128)
    h = layer(h, w5_ref, t5_ref, jnp.float32)               # (tile_n, emb) f32

    if fold_b > 1:
        # Small-N path: batch folded into M (tile_n == fold_b * fold_n), one grid step.
        # Per-sample max via static (sublane-aligned) slices; writes the full (B, emb) out.
        for b in range(fold_b):
            out_ref[b:b + 1, :] = jnp.max(
                h[b * fold_n:(b + 1) * fold_n], axis=0, keepdims=True)
    else:
        # Tiled path: accumulate the global max across point blocks in the resident
        # output tile.  ReLU output is >= 0, so 0 is a safe max-accumulator init.
        blk_max = jnp.max(h, axis=0, keepdims=True)         # (1, emb)

        @pl.when(pl.program_id(1) == 0)
        def _():
            out_ref[...] = jnp.zeros_like(out_ref)

        out_ref[...] = jnp.maximum(out_ref[...], blk_max)


def pointnet_encoder_forward(x_ncw, params, *, tile_n=4096):
    """x_ncw: (B, 3, N) float32, PyTorch NCW convention."""
    x = x_ncw.astype(jnp.float32)
    B, C, N = x.shape
    assert C == 3

    emb = params["w5"].shape[1]

    # Zero-pad channels 3 -> 16 and pre-cast the (only streamed) input to bf16.
    # The padded rows of w1 are zero, so results are unchanged.
    x_p = jnp.pad(x, ((0, 0), (0, _C_PAD - C), (0, 0))).astype(jnp.bfloat16)  # (B, 16, N)

    if B * N <= tile_n:
        # Fold batch into the matmul M dimension: one grid step total.
        fold_b, fold_n = B, N
        x_in = jnp.transpose(x_p, (1, 0, 2)).reshape(1, _C_PAD, B * N)
        grid = (1, 1)
        x_spec = pl.BlockSpec((1, _C_PAD, B * N), lambda b, n: (0, 0, 0))
        out_spec = pl.BlockSpec((B, emb), lambda b, n: (0, 0))
    else:
        fold_b = 1
        if N <= tile_n:
            blk_n, n_blocks = N, 1
        else:
            assert N % tile_n == 0 and tile_n % 128 == 0, (N, tile_n)
            blk_n, n_blocks = tile_n, N // tile_n
        fold_n = blk_n
        x_in = x_p
        grid = (B, n_blocks)
        x_spec = pl.BlockSpec((1, _C_PAD, blk_n), lambda b, n: (b, 0, n))
        out_spec = pl.BlockSpec((1, emb), lambda b, n: (b, 0))

    flat = [params["w1"], params["w2"], params["w3"], params["w4"], params["w5"],
            params["t1"], params["t2"], params["t3"], params["t4"], params["t5"]]

    def full_spec(p):
        nd = p.ndim
        return pl.BlockSpec(p.shape, lambda b, n, _nd=nd: (0,) * _nd)

    grid_spec = pltpu.PrefetchScalarGridSpec(
        num_scalar_prefetch=0,
        grid=grid,
        in_specs=[x_spec] + [full_spec(p) for p in flat],
        out_specs=out_spec,
    )

    kernel = functools.partial(_encoder_kernel, fold_b=fold_b, fold_n=fold_n)
    out = pl.pallas_call(
        kernel,
        out_shape=jax.ShapeDtypeStruct((B, emb), jnp.float32),
        grid_spec=grid_spec,
        compiler_params=pltpu.CompilerParams(
            dimension_semantics=("parallel", "arbitrary"),
            vmem_limit_bytes=32 * 1024 * 1024),
    )(x_in, *flat)

    # torch: F.adaptive_max_pool1d(x, 1).squeeze()  -> (B, emb), drops batch dim iff B == 1
    return jnp.squeeze(out)


def init_params(key, emb_dims=256):
    """Deterministic synthetic params.

    Conv weights stored transposed (C_in, C_out) with the eval-mode BatchNorm1d scale
    folded in and cast to bf16 (w1 zero-padded to (_C_PAD, 64)); the per-channel shift
    stays f32.  Conv1d has bias=False in the reference module.
    """
    dims = [(3, 64), (64, 64), (64, 64), (64, 128), (128, emb_dims)]
    params = {}
    keys = jax.random.split(key, 4 * len(dims))
    eps = 1e-5
    for i, (cin, cout) in enumerate(dims):
        kw, kg, kb, km = keys[4 * i: 4 * i + 4]
        w = jax.random.normal(kw, (cin, cout), jnp.float32) * 0.1      # conv weight^T
        gamma = 1.0 + 0.1 * jax.random.normal(kg, (1, cout), jnp.float32)
        beta = 0.1 * jax.random.normal(kb, (1, cout), jnp.float32)
        run_mean = 0.05 * jax.random.normal(km, (1, cout), jnp.float32)
        run_var = jnp.ones((1, cout), jnp.float32)
        scale = gamma / jnp.sqrt(run_var + eps)
        shift = beta - run_mean * scale
        w_folded = w * scale                                           # fold BN scale into W
        if i == 0:
            w_folded = jnp.pad(w_folded, ((0, _C_PAD - cin), (0, 0)))  # (16, 64)
        params[f"w{i + 1}"] = w_folded.astype(jnp.bfloat16)
        params[f"t{i + 1}"] = shift                                    # f32 shift
    return params


def _reference_forward(x_ncw, params):
    """Pure-JAX reference using the same (bf16-folded) weights, f32 activations."""
    B, C, N = x_ncw.shape
    h = jnp.transpose(x_ncw.astype(jnp.bfloat16).astype(jnp.float32), (0, 2, 1))
    h = jnp.pad(h, ((0, 0), (0, 0), (0, _C_PAD - C)))                  # (B, N, 16)
    for i in range(1, 6):
        w = params[f"w{i}"].astype(jnp.float32)
        h = jnp.maximum(h @ w + params[f"t{i}"], 0.0)
    return jnp.squeeze(jnp.max(h, axis=1))


if __name__ == "__main__":
    key = jax.random.PRNGKey(0)
    k_param, k_x = jax.random.split(key)

    EMB_DIMS = 256     # args.emb_dims
    B, N = 2, 64       # small point cloud: (B, 3, N)

    params = init_params(k_param, emb_dims=EMB_DIMS)
    x = jax.random.normal(k_x, (B, 3, N), jnp.float32)

    fwd = jax.jit(functools.partial(pointnet_encoder_forward, tile_n=4096))
    out = fwd(x, params)
    jax.block_until_ready(out)

    assert out.shape == (B, EMB_DIMS), out.shape
    ref = _reference_forward(x, params)
    assert jnp.allclose(out, ref, atol=2e-2, rtol=2e-2), \
        float(jnp.max(jnp.abs(out - ref)))
    print("KERNEL_OK")
</pallas_src>

<mosaic_0001>
module attributes {stable_mosaic.version = 11 : i64} {
  func.func @_encoder_kernel(%arg0: i32, %arg1: i32, %arg2: memref<1x16x128xbf16, #tpu.memory_space<vmem>>, %arg3: memref<16x64xbf16, #tpu.memory_space<vmem>>, %arg4: memref<64x64xbf16, #tpu.memory_space<vmem>>, %arg5: memref<64x64xbf16, #tpu.memory_space<vmem>>, %arg6: memref<64x128xbf16, #tpu.memory_space<vmem>>, %arg7: memref<128x256xbf16, #tpu.memory_space<vmem>>, %arg8: memref<1x64xf32, #tpu.memory_space<vmem>>, %arg9: memref<1x64xf32, #tpu.memory_space<vmem>>, %arg10: memref<1x64xf32, #tpu.memory_space<vmem>>, %arg11: memref<1x128xf32, #tpu.memory_space<vmem>>, %arg12: memref<1x256xf32, #tpu.memory_space<vmem>>, %arg13: memref<2x256xf32, #tpu.memory_space<vmem>>) attributes {dimension_semantics = [#tpu.dimension_semantics<parallel>, #tpu.dimension_semantics<arbitrary>], iteration_bounds = array<i64: 1, 1>, scalar_prefetch = 0 : i64, scratch_operands = 0 : i64, tpu.core_type = #tpu.core_type<tc>, window_params = [{pipeline_mode = #tpu.pipeline_mode<synchronous>, transform_indices = @transform_0, window_bounds = array<i64: 1, 16, 128>}, {pipeline_mode = #tpu.pipeline_mode<synchronous>, transform_indices = @transform_1, window_bounds = array<i64: 16, 64>}, {pipeline_mode = #tpu.pipeline_mode<synchronous>, transform_indices = @transform_2, window_bounds = array<i64: 64, 64>}, {pipeline_mode = #tpu.pipeline_mode<synchronous>, transform_indices = @transform_3, window_bounds = array<i64: 64, 64>}, {pipeline_mode = #tpu.pipeline_mode<synchronous>, transform_indices = @transform_4, window_bounds = array<i64: 64, 128>}, {pipeline_mode = #tpu.pipeline_mode<synchronous>, transform_indices = @transform_5, window_bounds = array<i64: 128, 256>}, {pipeline_mode = #tpu.pipeline_mode<synchronous>, transform_indices = @transform_6, window_bounds = array<i64: 1, 64>}, {pipeline_mode = #tpu.pipeline_mode<synchronous>, transform_indices = @transform_7, window_bounds = array<i64: 1, 64>}, {pipeline_mode = #tpu.pipeline_mode<synchronous>, transform_indices = @transform_8, window_bounds = array<i64: 1, 64>}, {pipeline_mode = #tpu.pipeline_mode<synchronous>, transform_indices = @transform_9, window_bounds = array<i64: 1, 128>}, {pipeline_mode = #tpu.pipeline_mode<synchronous>, transform_indices = @transform_10, window_bounds = array<i64: 1, 256>}, {pipeline_mode = #tpu.pipeline_mode<synchronous>, transform_indices = @transform_11, window_bounds = array<i64: 2, 256>}]} {
    %c0 = arith.constant 0 : index
    %c0_0 = arith.constant 0 : index
    %c0_1 = arith.constant 0 : index
    %0 = vector.load %arg2[%c0, %c0_0, %c0_1] : memref<1x16x128xbf16, #tpu.memory_space<vmem>>, vector<1x16x128xbf16>
    %1 = vector.shape_cast %0 : vector<1x16x128xbf16> to vector<16x128xbf16>
    %c0_2 = arith.constant 0 : index
    %c0_3 = arith.constant 0 : index
    %2 = vector.load %arg3[%c0_2, %c0_3] : memref<16x64xbf16, #tpu.memory_space<vmem>>, vector<16x64xbf16>
    %cst = arith.constant dense<0.000000e+00> : vector<128x64xf32>
    %3 = tpu.matmul %1, %2, %cst {dimension_numbers = #tpu.dot_dimension_numbers<[0], [0], [1], [1], [0, 1, 1, 1], [], []>} : vector<16x128xbf16>, vector<16x64xbf16>, vector<128x64xf32> -> vector<128x64xf32>
    %c0_4 = arith.constant 0 : index
    %c0_5 = arith.constant 0 : index
    %4 = vector.load %arg8[%c0_4, %c0_5] : memref<1x64xf32, #tpu.memory_space<vmem>>, vector<1x64xf32>
    %5 = vector.broadcast %4 : vector<1x64xf32> to vector<128x64xf32>
    %6 = arith.addf %3, %5 : vector<128x64xf32>
    %cst_6 = arith.constant 0.000000e+00 : f32
    %7 = vector.broadcast %cst_6 : f32 to vector<128x64xf32>
    %8 = arith.maximumf %6, %7 : vector<128x64xf32>
    %9 = arith.truncf %8 : vector<128x64xf32> to vector<128x64xbf16>
    %c0_7 = arith.constant 0 : index
    %c0_8 = arith.constant 0 : index
    %10 = vector.load %arg4[%c0_7, %c0_8] : memref<64x64xbf16, #tpu.memory_space<vmem>>, vector<64x64xbf16>
    %cst_9 = arith.constant dense<0.000000e+00> : vector<128x64xf32>
    %11 = tpu.matmul %9, %10, %cst_9 {dimension_numbers = #tpu.dot_dimension_numbers<[1], [0], [0], [1], [0, 0, 1, 1], [], []>} : vector<128x64xbf16>, vector<64x64xbf16>, vector<128x64xf32> -> vector<128x64xf32>
    %c0_10 = arith.constant 0 : index
    %c0_11 = arith.constant 0 : index
    %12 = vector.load %arg9[%c0_10, %c0_11] : memref<1x64xf32, #tpu.memory_space<vmem>>, vector<1x64xf32>
    %13 = vector.broadcast %12 : vector<1x64xf32> to vector<128x64xf32>
    %14 = arith.addf %11, %13 : vector<128x64xf32>
    %cst_12 = arith.constant 0.000000e+00 : f32
    %15 = vector.broadcast %cst_12 : f32 to vector<128x64xf32>
    %16 = arith.maximumf %14, %15 : vector<128x64xf32>
    %17 = arith.truncf %16 : vector<128x64xf32> to vector<128x64xbf16>
    %c0_13 = arith.constant 0 : index
    %c0_14 = arith.constant 0 : index
    %18 = vector.load %arg5[%c0_13, %c0_14] : memref<64x64xbf16, #tpu.memory_space<vmem>>, vector<64x64xbf16>
    %cst_15 = arith.constant dense<0.000000e+00> : vector<128x64xf32>
    %19 = tpu.matmul %17, %18, %cst_15 {dimension_numbers = #tpu.dot_dimension_numbers<[1], [0], [0], [1], [0, 0, 1, 1], [], []>} : vector<128x64xbf16>, vector<64x64xbf16>, vector<128x64xf32> -> vector<128x64xf32>
    %c0_16 = arith.constant 0 : index
    %c0_17 = arith.constant 0 : index
    %20 = vector.load %arg10[%c0_16, %c0_17] : memref<1x64xf32, #tpu.memory_space<vmem>>, vector<1x64xf32>
    %21 = vector.broadcast %20 : vector<1x64xf32> to vector<128x64xf32>
    %22 = arith.addf %19, %21 : vector<128x64xf32>
    %cst_18 = arith.constant 0.000000e+00 : f32
    %23 = vector.broadcast %cst_18 : f32 to vector<128x64xf32>
    %24 = arith.maximumf %22, %23 : vector<128x64xf32>
    %25 = arith.truncf %24 : vector<128x64xf32> to vector<128x64xbf16>
    %c0_19 = arith.constant 0 : index
    %c0_20 = arith.constant 0 : index
    %26 = vector.load %arg6[%c0_19, %c0_20] : memref<64x128xbf16, #tpu.memory_space<vmem>>, vector<64x128xbf16>
    %cst_21 = arith.constant dense<0.000000e+00> : vector<128x128xf32>
    %27 = tpu.matmul %25, %26, %cst_21 {dimension_numbers = #tpu.dot_dimension_numbers<[1], [0], [0], [1], [0, 0, 1, 1], [], []>} : vector<128x64xbf16>, vector<64x128xbf16>, vector<128x128xf32> -> vector<128x128xf32>
    %c0_22 = arith.constant 0 : index
    %c0_23 = arith.constant 0 : index
    %28 = vector.load %arg11[%c0_22, %c0_23] : memref<1x128xf32, #tpu.memory_space<vmem>>, vector<1x128xf32>
    %29 = vector.broadcast %28 : vector<1x128xf32> to vector<128x128xf32>
    %30 = arith.addf %27, %29 : vector<128x128xf32>
    %cst_24 = arith.constant 0.000000e+00 : f32
    %31 = vector.broadcast %cst_24 : f32 to vector<128x128xf32>
    %32 = arith.maximumf %30, %31 : vector<128x128xf32>
    %33 = arith.truncf %32 : vector<128x128xf32> to vector<128x128xbf16>
    %c0_25 = arith.constant 0 : index
    %c0_26 = arith.constant 0 : index
    %34 = vector.load %arg7[%c0_25, %c0_26] : memref<128x256xbf16, #tpu.memory_space<vmem>>, vector<128x256xbf16>
    %cst_27 = arith.constant dense<0.000000e+00> : vector<128x256xf32>
    %35 = tpu.matmul %33, %34, %cst_27 {dimension_numbers = #tpu.dot_dimension_numbers<[1], [0], [0], [1], [0, 0, 1, 1], [], []>} : vector<128x128xbf16>, vector<128x256xbf16>, vector<128x256xf32> -> vector<128x256xf32>
    %c0_28 = arith.constant 0 : index
    %c0_29 = arith.constant 0 : index
    %36 = vector.load %arg12[%c0_28, %c0_29] : memref<1x256xf32, #tpu.memory_space<vmem>>, vector<1x256xf32>
    %37 = vector.broadcast %36 : vector<1x256xf32> to vector<128x256xf32>
    %38 = arith.addf %35, %37 : vector<128x256xf32>
    %cst_30 = arith.constant 0.000000e+00 : f32
    %39 = vector.broadcast %cst_30 : f32 to vector<128x256xf32>
    %40 = arith.maximumf %38, %39 : vector<128x256xf32>
    %41 = vector.extract_strided_slice %40 {offsets = [0, 0], sizes = [64, 256], strides = [1, 1]} : vector<128x256xf32> to vector<64x256xf32>
    %cst_31 = arith.constant dense<0xFF800000> : vector<256xf32>
    %42 = vector.multi_reduction <maximumf>, %41, %cst_31 [0] : vector<64x256xf32> to vector<256xf32>
    %43 = vector.shape_cast %42 : vector<256xf32> to vector<1x256xf32>
    %c0_32 = arith.constant 0 : index
    %c0_33 = arith.constant 0 : index
    %44 = vector.load %arg13[%c0_32, %c0_33] : memref<2x256xf32, #tpu.memory_space<vmem>>, vector<1x256xf32>
    tpu.vector_store %arg13[%c0_32, %c0_33], %43 {strides = array<i32>} : memref<2x256xf32, #tpu.memory_space<vmem>>, vector<1x256xf32>,
    %45 = vector.extract_strided_slice %40 {offsets = [64, 0], sizes = [64, 256], strides = [1, 1]} : vector<128x256xf32> to vector<64x256xf32>
    %cst_34 = arith.constant dense<0xFF800000> : vector<256xf32>
    %46 = vector.multi_reduction <maximumf>, %45, %cst_34 [0] : vector<64x256xf32> to vector<256xf32>
    %47 = vector.shape_cast %46 : vector<256xf32> to vector<1x256xf32>
    %c1 = arith.constant 1 : index
    %c0_35 = arith.constant 0 : index
    %48 = vector.load %arg13[%c1, %c0_35] : memref<2x256xf32, #tpu.memory_space<vmem>>, vector<1x256xf32>
    tpu.vector_store %arg13[%c1, %c0_35], %47 {strides = array<i32>} : memref<2x256xf32, #tpu.memory_space<vmem>>, vector<1x256xf32>,
    return
  }
  func.func @transform_0(%arg0: i32, %arg1: i32) -> (i32, i32, i32) {
    %c0_i32 = arith.constant 0 : i32
    %c0_i32_0 = arith.constant 0 : i32
    %c0_i32_1 = arith.constant 0 : i32
    %c0_i32_2 = arith.constant 0 : i32
    return %c0_i32, %c0_i32_0, %c0_i32_1 : i32, i32, i32
  }
  func.func @transform_1(%arg0: i32, %arg1: i32) -> (i32, i32) {
    %c0_i32 = arith.constant 0 : i32
    %c0_i32_0 = arith.constant 0 : i32
    %c0_i32_1 = arith.constant 0 : i32
    return %c0_i32, %c0_i32_0 : i32, i32
  }
  func.func @transform_2(%arg0: i32, %arg1: i32) -> (i32, i32) {
    %c0_i32 = arith.constant 0 : i32
    %c0_i32_0 = arith.constant 0 : i32
    %c0_i32_1 = arith.constant 0 : i32
    return %c0_i32, %c0_i32_0 : i32, i32
  }
  func.func @transform_3(%arg0: i32, %arg1: i32) -> (i32, i32) {
    %c0_i32 = arith.constant 0 : i32
    %c0_i32_0 = arith.constant 0 : i32
    %c0_i32_1 = arith.constant 0 : i32
    return %c0_i32, %c0_i32_0 : i32, i32
  }
  func.func @transform_4(%arg0: i32, %arg1: i32) -> (i32, i32) {
    %c0_i32 = arith.constant 0 : i32
    %c0_i32_0 = arith.constant 0 : i32
    %c0_i32_1 = arith.constant 0 : i32
    return %c0_i32, %c0_i32_0 : i32, i32
  }
  func.func @transform_5(%arg0: i32, %arg1: i32) -> (i32, i32) {
    %c0_i32 = arith.constant 0 : i32
    %c0_i32_0 = arith.constant 0 : i32
    %c0_i32_1 = arith.constant 0 : i32
    return %c0_i32, %c0_i32_0 : i32, i32
  }
  func.func @transform_6(%arg0: i32, %arg1: i32) -> (i32, i32) {
    %c0_i32 = arith.constant 0 : i32
    %c0_i32_0 = arith.constant 0 : i32
    %c0_i32_1 = arith.constant 0 : i32
    return %c0_i32, %c0_i32_0 : i32, i32
  }
  func.func @transform_7(%arg0: i32, %arg1: i32) -> (i32, i32) {
    %c0_i32 = arith.constant 0 : i32
    %c0_i32_0 = arith.constant 0 : i32
    %c0_i32_1 = arith.constant 0 : i32
    return %c0_i32, %c0_i32_0 : i32, i32
  }
  func.func @transform_8(%arg0: i32, %arg1: i32) -> (i32, i32) {
    %c0_i32 = arith.constant 0 : i32
    %c0_i32_0 = arith.constant 0 : i32
    %c0_i32_1 = arith.constant 0 : i32
    return %c0_i32, %c0_i32_0 : i32, i32
  }
  func.func @transform_9(%arg0: i32, %arg1: i32) -> (i32, i32) {
    %c0_i32 = arith.constant 0 : i32
    %c0_i32_0 = arith.constant 0 : i32
    %c0_i32_1 = arith.constant 0 : i32
    return %c0_i32, %c0_i32_0 : i32, i32
  }
  func.func @transform_10(%arg0: i32, %arg1: i32) -> (i32, i32) {
    %c0_i32 = arith.constant 0 : i32
    %c0_i32_0 = arith.constant 0 : i32
    %c0_i32_1 = arith.constant 0 : i32
    return %c0_i32, %c0_i32_0 : i32, i32
  }
  func.func @transform_11(%arg0: i32, %arg1: i32) -> (i32, i32) {
    %c0_i32 = arith.constant 0 : i32
    %c0_i32_0 = arith.constant 0 : i32
    %c0_i32_1 = arith.constant 0 : i32
    return %c0_i32, %c0_i32_0 : i32, i32
  }
}

</mosaic_0001>

<llo_original>
// kernel: pointnet_encoder_forward.1
$region0: #{pointnet_encoder_forward.1}
  #allocation0 [shape = 'u32[]', space=smem, size = 0x4, offset = 0x4, fixed_abs, tag = 'smem constant byte address 0x4 - core index']
  #allocation1 [shape = 'u32[144,128]{1,0:T(1,128)}', space=vmem, size = 0x12000, scoped, tag = 'internal scratch']
  %s0 = inlined_call_operand.vmem [shape: bf16[1,16,128], index: 0, kind: input, shape index: {}]
  %s1 = inlined_call_operand.vmem [shape: bf16[16,64], index: 1, kind: input, shape index: {}]
  %s2 = inlined_call_operand.vmem [shape: bf16[64,64], index: 2, kind: input, shape index: {}]
  %s3 = inlined_call_operand.vmem [shape: bf16[64,64], index: 3, kind: input, shape index: {}]
  %s4 = inlined_call_operand.hbm [shape: bf16[64,128], index: 4, kind: input, shape index: {}]
  %s5 = inlined_call_operand.hbm [shape: bf16[128,256], index: 5, kind: input, shape index: {}]
  %s6 = inlined_call_operand.hbm [shape: f32[1,64], index: 6, kind: input, shape index: {}]
  %s7 = inlined_call_operand.hbm [shape: f32[1,64], index: 7, kind: input, shape index: {}]
  %s8 = inlined_call_operand.hbm [shape: f32[1,64], index: 8, kind: input, shape index: {}]
  %s9 = inlined_call_operand.hbm [shape: f32[1,128], index: 9, kind: input, shape index: {}]
  %s10 = inlined_call_operand.vmem [shape: f32[1,256], index: 10, kind: input, shape index: {}]
  %s11 = inlined_call_operand.hbm [shape: f32[2,256], index: 11, kind: output, shape index: {}]
  %s12 = sld [smem:[#allocation0]]
  $region78: #{pointnet_encoder_forward.1} parent=0
    _
  %s14 = ssub.s32 1, %s12
  %s15 = scalar_select 0, %s14, %s12
  $region1: #{pointnet_encoder_forward.1} parent=0
    #allocation2 [shape = 'u8[16384]{0}', space=vmem, size = 0x4000, scoped, tag = 'input window, operand 4, single buffered']
    #allocation3 [shape = 's32[1]{0}', space=sflag, size = 0x4, scoped, tag = 'scoped memory for pointnet_encoder_forward.1']
    #allocation4 [shape = 's32[1]{0}', space=sflag, size = 0x4, scoped, tag = 'scoped memory for pointnet_encoder_forward.1']
    #allocation5 [shape = 'u8[65536]{0}', space=vmem, size = 0x10000, scoped, tag = 'input window, operand 5, single buffered']
    #allocation6 [shape = 's32[1]{0}', space=sflag, size = 0x4, scoped, tag = 'scoped memory for pointnet_encoder_forward.1']
    #allocation7 [shape = 'u8[512]{0}', space=vmem, size = 0x400, scoped, tag = 'input window, operand 6, single buffered']
    #allocation8 [shape = 'u8[512]{0}', space=vmem, size = 0x400, scoped, tag = 'input window, operand 7, single buffered']
    #allocation9 [shape = 's32[1]{0}', space=sflag, size = 0x4, scoped, tag = 'scoped memory for pointnet_encoder_forward.1']
    #allocation10 [shape = 'u8[512]{0}', space=vmem, size = 0x400, scoped, tag = 'input window, operand 8, single buffered']
    #allocation11 [shape = 'u8[512]{0}', space=vmem, size = 0x400, scoped, tag = 'input window, operand 9, single buffered']
    #allocation12 [shape = 's32[1]{0}', space=sflag, size = 0x4, scoped, tag = 'scoped memory for pointnet_encoder_forward.1']
    #allocation13 [shape = 'u8[2048]{0}', space=vmem, size = 0x800, scoped, tag = 'output window, operand 0, single buffered']
    %16 = vsyncpa [#allocation3], 0
    %17 = vsyncpa [#allocation6], 0
    %18 = vsyncpa [#allocation9], 0
    %19 = vsyncpa [#allocation12], 0
    %20 = vsyncpa [#allocation4], 0
    // Predicated region
    $region2: #{pointnet_encoder_forward.1} parent=1 // pred_check
      _
    $region3: #{pointnet_encoder_forward.1} parent=1 // pred_check_branch
      %22 = sbr.rel (0) target = $region5
    $region4: #{pointnet_encoder_forward.1} parent=1 // pred_region
      _
    $region5: #{pointnet_encoder_forward.1} parent=1 // pred_fallthru
      _
    // Predicated region
    $region6: #{pointnet_encoder_forward.1} parent=1 // pred_check
      _
    $region7: #{pointnet_encoder_forward.1} parent=1 // pred_check_branch
      %24 = sbr.rel (0) target = $region9
    $region8: #{pointnet_encoder_forward.1} parent=1 // pred_region
      _
    $region9: #{pointnet_encoder_forward.1} parent=1 // pred_fallthru
      _
    // Predicated region
    $region10: #{pointnet_encoder_forward.1} parent=1 // pred_check
      _
    $region11: #{pointnet_encoder_forward.1} parent=1 // pred_check_branch
      %26 = sbr.rel (0) target = $region13
    $region12: #{pointnet_encoder_forward.1} parent=1 // pred_region
      _
    $region13: #{pointnet_encoder_forward.1} parent=1 // pred_fallthru
      _
    // Predicated region
    $region14: #{pointnet_encoder_forward.1} parent=1 // pred_check
      _
    $region15: #{pointnet_encoder_forward.1} parent=1 // pred_check_branch
      %28 = sbr.rel (0) target = $region17
    $region16: #{pointnet_encoder_forward.1} parent=1 // pred_region
      _
    $region17: #{pointnet_encoder_forward.1} parent=1 // pred_fallthru
      _
    // Predicated region
    $region18: #{pointnet_encoder_forward.1} parent=1 // pred_check
      _
    $region19: #{pointnet_encoder_forward.1} parent=1 // pred_check_branch
      %30 = sbr.rel (0) target = $region21
    $region20: #{pointnet_encoder_forward.1} parent=1 // pred_region
      %s32 = ssub.s32 512, 512
      %33 = vsyncadd [#allocation3], %s32
      %s34 = sshll.u32 [#allocation2], 4
      %s35 = int_to_ptr.vmem [resolvable:$true] %s34
      %40 = dma.hbm_to_vmem [thread:$0]  %s4, 512, %s35, [#allocation3], 64, 64, 4
    $region21: #{pointnet_encoder_forward.1} parent=1 // pred_fallthru
      _
    // Predicated region
    $region22: #{pointnet_encoder_forward.1} parent=1 // pred_check
      _
    $region23: #{pointnet_encoder_forward.1} parent=1 // pred_check_branch
      %42 = sbr.rel (0) target = $region25
    $region24: #{pointnet_encoder_forward.1} parent=1 // pred_region
      %s44 = ssub.s32 2048, 2048
      %45 = vsyncadd [#allocation6], %s44
      %s46 = sshll.u32 [#allocation5], 4
      %s47 = int_to_ptr.vmem [resolvable:$true] %s46
      %52 = dma.hbm_to_vmem [thread:$0]  %s5, 2048, %s47, [#allocation6], 128, 128, 8
    $region25: #{pointnet_encoder_forward.1} parent=1 // pred_fallthru
      _
    // Predicated region
    $region26: #{pointnet_encoder_forward.1} parent=1 // pred_check
      _
    $region27: #{pointnet_encoder_forward.1} parent=1 // pred_check_branch
      %54 = sbr.rel (0) target = $region29
    $region28: #{pointnet_encoder_forward.1} parent=1 // pred_region
      %s56 = ssub.s32 16, 16
      %57 = vsyncadd [#allocation6], %s56
      %s59 = sshll.u32 [#allocation7], 4
      %s60 = int_to_ptr.vmem [resolvable:$true] %s59
      %62 = dma.hbm_to_vmem [thread:$0]  %s6, 16, %s60, [#allocation6]
    $region29: #{pointnet_encoder_forward.1} parent=1 // pred_fallthru
      _
    // Predicated region
    $region30: #{pointnet_encoder_forward.1} parent=1 // pred_check
      _
    $region31: #{pointnet_encoder_forward.1} parent=1 // pred_check_branch
      %64 = sbr.rel (0) target = $region33
    $region32: #{pointnet_encoder_forward.1} parent=1 // pred_region
      %s66 = ssub.s32 16, 16
      %67 = vsyncadd [#allocation9], %s66
      %s69 = sshll.u32 [#allocation8], 4
      %s70 = int_to_ptr.vmem [resolvable:$true] %s69
      %72 = dma.hbm_to_vmem [thread:$0]  %s7, 16, %s70, [#allocation9]
    $region33: #{pointnet_encoder_forward.1} parent=1 // pred_fallthru
      _
    // Predicated region
    $region34: #{pointnet_encoder_forward.1} parent=1 // pred_check
      _
    $region35: #{pointnet_encoder_forward.1} parent=1 // pred_check_branch
      %74 = sbr.rel (0) target = $region37
    $region36: #{pointnet_encoder_forward.1} parent=1 // pred_region
      %s76 = ssub.s32 16, 16
      %77 = vsyncadd [#allocation9], %s76
      %s79 = sshll.u32 [#allocation10], 4
      %s80 = int_to_ptr.vmem [resolvable:$true] %s79
      %82 = dma.hbm_to_vmem [thread:$0]  %s8, 16, %s80, [#allocation9]
    $region37: #{pointnet_encoder_forward.1} parent=1 // pred_fallthru
      _
    // Predicated region
    $region38: #{pointnet_encoder_forward.1} parent=1 // pred_check
      _
    $region39: #{pointnet_encoder_forward.1} parent=1 // pred_check_branch
      %84 = sbr.rel (0) target = $region41
    $region40: #{pointnet_encoder_forward.1} parent=1 // pred_region
      %s86 = ssub.s32 16, 16
      %87 = vsyncadd [#allocation12], %s86
      %s89 = sshll.u32 [#allocation11], 4
      %s90 = int_to_ptr.vmem [resolvable:$true] %s89
      %92 = dma.hbm_to_vmem [thread:$0]  %s9, 16, %s90, [#allocation12]
    $region41: #{pointnet_encoder_forward.1} parent=1 // pred_fallthru
      _
    // Predicated region
    $region42: #{pointnet_encoder_forward.1} parent=1 // pred_check
      _
    $region43: #{pointnet_encoder_forward.1} parent=1 // pred_check_branch
      %94 = sbr.rel (0) target = $region45
    $region44: #{pointnet_encoder_forward.1} parent=1 // pred_region
      _
    $region45: #{pointnet_encoder_forward.1} parent=1 // pred_fallthru
      _
    // Predicated region
    $region46: #{pointnet_encoder_forward.1} parent=1 // pred_check
      _
    $region47: #{pointnet_encoder_forward.1} parent=1 // pred_check_branch
      %96 = sbr.rel (0) target = $region49
    $region48: #{pointnet_encoder_forward.1} parent=1 // pred_region
      %97 = dma.done [#allocation3], 512
    $region49: #{pointnet_encoder_forward.1} parent=1 // pred_fallthru
      _
    // Predicated region
    $region50: #{pointnet_encoder_forward.1} parent=1 // pred_check
      _
    $region51: #{pointnet_encoder_forward.1} parent=1 // pred_check_branch
      %99 = sbr.rel (0) target = $region53
    $region52: #{pointnet_encoder_forward.1} parent=1 // pred_region
      %100 = dma.done [#allocation6], 2048
    $region53: #{pointnet_encoder_forward.1} parent=1 // pred_fallthru
      _
    // Predicated region
    $region54: #{pointnet_encoder_forward.1} parent=1 // pred_check
      _
    $region55: #{pointnet_encoder_forward.1} parent=1 // pred_check_branch
      %102 = sbr.rel (0) target = $region57
    $region56: #{pointnet_encoder_forward.1} parent=1 // pred_region
      %103 = dma.done [#allocation6], 16
    $region57: #{pointnet_encoder_forward.1} parent=1 // pred_fallthru
      _
    // Predicated region
    $region58: #{pointnet_encoder_forward.1} parent=1 // pred_check
      _
    $region59: #{pointnet_encoder_forward.1} parent=1 // pred_check_branch
      %105 = sbr.rel (0) target = $region61
    $region60: #{pointnet_encoder_forward.1} parent=1 // pred_region
      %106 = dma.done [#allocation9], 16
    $region61: #{pointnet_encoder_forward.1} parent=1 // pred_fallthru
      _
    // Predicated region
    $region62: #{pointnet_encoder_forward.1} parent=1 // pred_check
      _
    $region63: #{pointnet_encoder_forward.1} parent=1 // pred_check_branch
      %108 = sbr.rel (0) target = $region65
    $region64: #{pointnet_encoder_forward.1} parent=1 // pred_region
      %109 = dma.done [#allocation9], 16
    $region65: #{pointnet_encoder_forward.1} parent=1 // pred_fallthru
      _
    // Predicated region
    $region66: #{pointnet_encoder_forward.1} parent=1 // pred_check
      _
    $region67: #{pointnet_encoder_forward.1} parent=1 // pred_check_branch
      %111 = sbr.rel (0) target = $region69
    $region68: #{pointnet_encoder_forward.1} parent=1 // pred_region
      %112 = dma.done [#allocation12], 16
    $region69: #{pointnet_encoder_forward.1} parent=1 // pred_fallthru
      _
    %v114 = vld [vmem:[%s0] sm:$0xf]
    %v115 = vld [vmem:[%s0 + $0x4] sm:$0xf]
    %v116 = vld [vmem:[%s1] sm:$0xf]
    %v117 = vld [vmem:[%s1 + $0x4] sm:$0xf]
    %v118 = vld [vmem:[#allocation7] sm:$0x1]
    %v120 = vlaneseq
    %v121 = vshrl.u32 %v120, 7
    %v122 = vsub.s32 0, %v121
    %v123 = vrot.slane %v118, %v122
    %v127 = vunpack.c.l.b16 %v114
    %v128 = vunpack.c.l.b16 %v115
    %v129 = vpack.c.b16 %v128, %v127
    %131 = vxpose.xlu0.c.b16.start [1/8] %v129, 128
    %132 = vxpose.xlu0.c.b16.cont [2/8] 0, 128
    %133 = vxpose.xlu0.c.b16.cont [3/8] 0, 128
    %134 = vxpose.xlu0.c.b16.cont [4/8] 0, 128
    %135 = vxpose.xlu0.c.b16.cont [5/8] 0, 128
    %136 = vxpose.xlu0.c.b16.cont [6/8] 0, 128
    %137 = vxpose.xlu0.c.b16.cont [7/8] 0, 128
    %138 = vxpose.xlu0.c.b16.end [8/8] 0, 128
    %v139 = vpop.trf.xlu0
    %v140 = vpop.trf.xlu0
    %v141 = vpop.trf.xlu0
    %v142 = vpop.trf.xlu0
    %v143 = vpop.trf.xlu0
    %v144 = vpop.trf.xlu0
    %v145 = vpop.trf.xlu0
    %v146 = vpop.trf.xlu0
    %v149 = vunpack.c.l.b16 %v116
    %v150 = vunpack.c.l.b16 %v117
    %v151 = vpack.c.b16 %v150, %v149
    %vm153 = vcmask 130048
    %v155 = vsel %vm153, %v139, 0
    %v158 = vsel %vm153, %v140, 0
    %v161 = vsel %vm153, %v141, 0
    %v164 = vsel %vm153, %v142, 0
    %v167 = vsel %vm153, %v143, 0
    %v170 = vsel %vm153, %v144, 0
    %v173 = vsel %vm153, %v145, 0
    %v176 = vsel %vm153, %v146, 0
    %178 = vmatprep.subr.bf16.mxu0 0
    %179 = vmatpush1.bf16.msra.mxu0 %v151
    %180 = vmatprep.subr.bf16.mxu0 0
    %181 = vmatpush1.bf16.msra.mxu0 0
    %182 = vmatprep.subr.bf16.mxu0 0
    %183 = vmatpush1.bf16.msra.mxu0 0
    %184 = vmatprep.subr.bf16.mxu0 0
    %185 = vmatpush1.bf16.msra.mxu0 0
    %186 = vmatprep.subr.bf16.mxu0 0
    %187 = vmatpush1.bf16.msra.mxu0 0
    %188 = vmatprep.subr.bf16.mxu0 0
    %189 = vmatpush1.bf16.msra.mxu0 0
    %190 = vmatprep.subr.bf16.mxu0 0
    %191 = vmatpush1.bf16.msra.mxu0 0
    %192 = vmatprep.subr.bf16.mxu0 0
    %193 = vmatpush1.bf16.msra.mxu0 0
    %194 = vmatprep.subr.bf16.mxu0 0
    %195 = vmatpush1.bf16.msra.mxu0 0
    %196 = vmatprep.subr.bf16.mxu0 0
    %197 = vmatpush1.bf16.msra.mxu0 0
    %198 = vmatprep.subr.bf16.mxu0 0
    %199 = vmatpush1.bf16.msra.mxu0 0
    %200 = vmatprep.subr.bf16.mxu0 0
    %201 = vmatpush1.bf16.msra.mxu0 0
    %202 = vmatprep.subr.bf16.mxu0 0
    %203 = vmatpush1.bf16.msra.mxu0 0
    %204 = vmatprep.subr.bf16.mxu0 0
    %205 = vmatpush1.bf16.msra.mxu0 0
    %206 = vmatprep.subr.bf16.mxu0 0
    %207 = vmatpush1.bf16.msra.mxu0 0
    %208 = vmatprep.subr.bf16.mxu0 0
    %209 = vmatpush1.bf16.msra.mxu0 0
    %210 = vmatprep.mubr.bf16.mxu0 0
    %211 = vmatmul.mubr.bf16.gmra.mrb[0].mxu0 %v155
    %v212 = vpop.f32.mrb[0].mxu0
    %v213 = vadd.f32 %v123, %v212
    %v214 = vpop.f32.mrb[0].mxu0
    %v215 = vpop.f32.mrb[0].mxu0
    %v216 = vadd.f32 %v123, %v215
    %v217 = vpop.f32.mrb[0].mxu0
    %218 = vmatprep.mubr.bf16.mxu0 0
    %219 = vmatmul.mubr.bf16.gmra.mrb[0].mxu0 %v158
    %v220 = vpop.f32.mrb[0].mxu0
    %v221 = vadd.f32 %v123, %v220
    %v222 = vpop.f32.mrb[0].mxu0
    %v223 = vpop.f32.mrb[0].mxu0
    %v224 = vadd.f32 %v123, %v223
    %v225 = vpop.f32.mrb[0].mxu0
    %226 = vmatprep.mubr.bf16.mxu0 0
    %227 = vmatmul.mubr.bf16.gmra.mrb[0].mxu0 %v161
    %v228 = vpop.f32.mrb[0].mxu0
    %v229 = vadd.f32 %v123, %v228
    %v230 = vpop.f32.mrb[0].mxu0
    %v231 = vpop.f32.mrb[0].mxu0
    %v232 = vadd.f32 %v123, %v231
    %v233 = vpop.f32.mrb[0].mxu0
    %234 = vmatprep.mubr.bf16.mxu0 0
    %235 = vmatmul.mubr.bf16.gmra.mrb[0].mxu0 %v164
    %v236 = vpop.f32.mrb[0].mxu0
    %v237 = vadd.f32 %v123, %v236
    %v238 = vpop.f32.mrb[0].mxu0
    %v239 = vpop.f32.mrb[0].mxu0
    %v240 = vadd.f32 %v123, %v239
    %v241 = vpop.f32.mrb[0].mxu0
    %242 = vmatprep.mubr.bf16.mxu0 0
    %243 = vmatmul.mubr.bf16.gmra.mrb[0].mxu0 %v167
    %v244 = vpop.f32.mrb[0].mxu0
    %v245 = vadd.f32 %v123, %v244
    %v246 = vpop.f32.mrb[0].mxu0
    %v247 = vpop.f32.mrb[0].mxu0
    %v248 = vadd.f32 %v123, %v247
    %v249 = vpop.f32.mrb[0].mxu0
    %250 = vmatprep.mubr.bf16.mxu0 0
    %251 = vmatmul.mubr.bf16.gmra.mrb[0].mxu0 %v170
    %v252 = vpop.f32.mrb[0].mxu0
    %v253 = vadd.f32 %v123, %v252
    %v254 = vpop.f32.mrb[0].mxu0
    %v255 = vpop.f32.mrb[0].mxu0
    %v256 = vadd.f32 %v123, %v255
    %v257 = vpop.f32.mrb[0].mxu0
    %258 = vmatprep.mubr.bf16.mxu0 0
    %259 = vmatmul.mubr.bf16.gmra.mrb[0].mxu0 %v173
    %v260 = vpop.f32.mrb[0].mxu0
    %v261 = vadd.f32 %v123, %v260
    %v262 = vpop.f32.mrb[0].mxu0
    %v263 = vpop.f32.mrb[0].mxu0
    %v264 = vadd.f32 %v123, %v263
    %v265 = vpop.f32.mrb[0].mxu0
    %266 = vmatprep.mubr.bf16.mxu0 0
    %267 = vmatmul.mubr.bf16.gmra.mrb[0].mxu0 %v176
    %v268 = vpop.f32.mrb[0].mxu0
    %v269 = vadd.f32 %v123, %v268
    %v270 = vpop.f32.mrb[0].mxu0
    %v271 = vpop.f32.mrb[0].mxu0
    %v272 = vadd.f32 %v123, %v271
    %v273 = vpop.f32.mrb[0].mxu0
    %274 = vdwg.mxu0
    %v275 = vmax.f32 %v213, 0.0
    %v276 = vmax.f32 %v216, 0.0
    %v277 = vmax.f32 %v221, 0.0
    %v278 = vmax.f32 %v224, 0.0
    %v279 = vmax.f32 %v229, 0.0
    %v280 = vmax.f32 %v232, 0.0
    %v281 = vmax.f32 %v237, 0.0
    %v282 = vmax.f32 %v240, 0.0
    %v283 = vmax.f32 %v245, 0.0
    %v284 = vmax.f32 %v248, 0.0
    %v285 = vmax.f32 %v253, 0.0
    %v286 = vmax.f32 %v256, 0.0
    %v287 = vmax.f32 %v261, 0.0
    %v288 = vmax.f32 %v264, 0.0
    %v289 = vmax.f32 %v269, 0.0
    %v290 = vmax.f32 %v272, 0.0
    %v291 = vpack.c.bf16 %v276, %v275
    %v292 = vpack.c.bf16 %v278, %v277
    %v293 = vpack.c.bf16 %v280, %v279
    %v294 = vpack.c.bf16 %v282, %v281
    %v295 = vpack.c.bf16 %v284, %v283
    %v296 = vpack.c.bf16 %v286, %v285
    %v297 = vpack.c.bf16 %v288, %v287
    %v298 = vpack.c.bf16 %v290, %v289
    %v299 = vld [vmem:[%s2] sm:$0xf]
    %v300 = vld [vmem:[%s2 + $0x4] sm:$0xf]
    %v301 = vld [vmem:[%s2 + $0x8] sm:$0xf]
    %v302 = vld [vmem:[%s2 + $0xc] sm:$0xf]
    %v303 = vld [vmem:[%s2 + $0x10] sm:$0xf]
    %v304 = vld [vmem:[%s2 + $0x14] sm:$0xf]
    %v305 = vld [vmem:[%s2 + $0x18] sm:$0xf]
    %v306 = vld [vmem:[%s2 + $0x1c] sm:$0xf]
    %v307 = vld [vmem:[#allocation8] sm:$0x1]
    %v309 = vlaneseq
    %v310 = vshrl.u32 %v309, 7
    %v311 = vsub.s32 0, %v310
    %v312 = vrot.slane %v307, %v311
    %v322 = vunpack.c.l.b16 %v299
    %v323 = vunpack.c.l.b16 %v300
    %v324 = vunpack.c.l.b16 %v301
    %v325 = vunpack.c.l.b16 %v302
    %v326 = vunpack.c.l.b16 %v303
    %v327 = vunpack.c.l.b16 %v304
    %v328 = vunpack.c.l.b16 %v305
    %v329 = vunpack.c.l.b16 %v306
    %v330 = vpack.c.b16 %v323, %v322
    %v331 = vpack.c.b16 %v325, %v324
    %v332 = vpack.c.b16 %v327, %v326
    %v333 = vpack.c.b16 %v329, %v328
    %vm338 = vcmask 523264
    %v340 = vsel %vm338, %v291, 0
    %v343 = vsel %vm338, %v292, 0
    %v346 = vsel %vm338, %v293, 0
    %v349 = vsel %vm338, %v294, 0
    %v352 = vsel %vm338, %v295, 0
    %v355 = vsel %vm338, %v296, 0
    %v358 = vsel %vm338, %v297, 0
    %v361 = vsel %vm338, %v298, 0
    %363 = vmatprep.subr.bf16.mxu0 0
    %364 = vmatpush1.bf16.msra.mxu0 %v330
    %365 = vmatprep.subr.bf16.mxu0 0
    %366 = vmatpush1.bf16.msra.mxu0 %v331
    %367 = vmatprep.subr.bf16.mxu0 0
    %368 = vmatpush1.bf16.msra.mxu0 %v332
    %369 = vmatprep.subr.bf16.mxu0 0
    %370 = vmatpush1.bf16.msra.mxu0 %v333
    %371 = vmatprep.subr.bf16.mxu0 0
    %372 = vmatpush1.bf16.msra.mxu0 0
    %373 = vmatprep.subr.bf16.mxu0 0
    %374 = vmatpush1.bf16.msra.mxu0 0
    %375 = vmatprep.subr.bf16.mxu0 0
    %376 = vmatpush1.bf16.msra.mxu0 0
    %377 = vmatprep.subr.bf16.mxu0 0
    %378 = vmatpush1.bf16.msra.mxu0 0
    %379 = vmatprep.subr.bf16.mxu0 0
    %380 = vmatpush1.bf16.msra.mxu0 0
    %381 = vmatprep.subr.bf16.mxu0 0
    %382 = vmatpush1.bf16.msra.mxu0 0
    %383 = vmatprep.subr.bf16.mxu0 0
    %384 = vmatpush1.bf16.msra.mxu0 0
    %385 = vmatprep.subr.bf16.mxu0 0
    %386 = vmatpush1.bf16.msra.mxu0 0
    %387 = vmatprep.subr.bf16.mxu0 0
    %388 = vmatpush1.bf16.msra.mxu0 0
    %389 = vmatprep.subr.bf16.mxu0 0
    %390 = vmatpush1.bf16.msra.mxu0 0
    %391 = vmatprep.subr.bf16.mxu0 0
    %392 = vmatpush1.bf16.msra.mxu0 0
    %393 = vmatprep.subr.bf16.mxu0 0
    %394 = vmatpush1.bf16.msra.mxu0 0
    %395 = vmatprep.mubr.bf16.mxu0 0
    %396 = vmatmul.mubr.bf16.gmra.mrb[0].mxu0 %v340
    %v397 = vpop.f32.mrb[0].mxu0
    %v398 = vadd.f32 %v312, %v397
    %v399 = vpop.f32.mrb[0].mxu0
    %v400 = vpop.f32.mrb[0].mxu0
    %v401 = vadd.f32 %v312, %v400
    %v402 = vpop.f32.mrb[0].mxu0
    %403 = vmatprep.mubr.bf16.mxu0 0
    %404 = vmatmul.mubr.bf16.gmra.mrb[0].mxu0 %v343
    %v405 = vpop.f32.mrb[0].mxu0
    %v406 = vadd.f32 %v312, %v405
    %v407 = vpop.f32.mrb[0].mxu0
    %v408 = vpop.f32.mrb[0].mxu0
    %v409 = vadd.f32 %v312, %v408
    %v410 = vpop.f32.mrb[0].mxu0
    %411 = vmatprep.mubr.bf16.mxu0 0
    %412 = vmatmul.mubr.bf16.gmra.mrb[0].mxu0 %v346
    %v413 = vpop.f32.mrb[0].mxu0
    %v414 = vadd.f32 %v312, %v413
    %v415 = vpop.f32.mrb[0].mxu0
    %v416 = vpop.f32.mrb[0].mxu0
    %v417 = vadd.f32 %v312, %v416
    %v418 = vpop.f32.mrb[0].mxu0
    %419 = vmatprep.mubr.bf16.mxu0 0
    %420 = vmatmul.mubr.bf16.gmra.mrb[0].mxu0 %v349
    %v421 = vpop.f32.mrb[0].mxu0
    %v422 = vadd.f32 %v312, %v421
    %v423 = vpop.f32.mrb[0].mxu0
    %v424 = vpop.f32.mrb[0].mxu0
    %v425 = vadd.f32 %v312, %v424
    %v426 = vpop.f32.mrb[0].mxu0
    %427 = vmatprep.mubr.bf16.mxu0 0
    %428 = vmatmul.mubr.bf16.gmra.mrb[0].mxu0 %v352
    %v429 = vpop.f32.mrb[0].mxu0
    %v430 = vadd.f32 %v312, %v429
    %v431 = vpop.f32.mrb[0].mxu0
    %v432 = vpop.f32.mrb[0].mxu0
    %v433 = vadd.f32 %v312, %v432
    %v434 = vpop.f32.mrb[0].mxu0
    %435 = vmatprep.mubr.bf16.mxu0 0
    %436 = vmatmul.mubr.bf16.gmra.mrb[0].mxu0 %v355
    %v437 = vpop.f32.mrb[0].mxu0
    %v438 = vadd.f32 %v312, %v437
    %v439 = vpop.f32.mrb[0].mxu0
    %v440 = vpop.f32.mrb[0].mxu0
    %v441 = vadd.f32 %v312, %v440
    %v442 = vpop.f32.mrb[0].mxu0
    %443 = vmatprep.mubr.bf16.mxu0 0
    %444 = vmatmul.mubr.bf16.gmra.mrb[0].mxu0 %v358
    %v445 = vpop.f32.mrb[0].mxu0
    %v446 = vadd.f32 %v312, %v445
    %v447 = vpop.f32.mrb[0].mxu0
    %v448 = vpop.f32.mrb[0].mxu0
    %v449 = vadd.f32 %v312, %v448
    %v450 = vpop.f32.mrb[0].mxu0
    %451 = vmatprep.mubr.bf16.mxu0 0
    %452 = vmatmul.mubr.bf16.gmra.mrb[0].mxu0 %v361
    %v453 = vpop.f32.mrb[0].mxu0
    %v454 = vadd.f32 %v312, %v453
    %v455 = vpop.f32.mrb[0].mxu0
    %v456 = vpop.f32.mrb[0].mxu0
    %v457 = vadd.f32 %v312, %v456
    %v458 = vpop.f32.mrb[0].mxu0
    %459 = vdwg.mxu0
    %v460 = vmax.f32 %v398, 0.0
    %v461 = vmax.f32 %v401, 0.0
    %v462 = vmax.f32 %v406, 0.0
    %v463 = vmax.f32 %v409, 0.0
    %v464 = vmax.f32 %v414, 0.0
    %v465 = vmax.f32 %v417, 0.0
    %v466 = vmax.f32 %v422, 0.0
    %v467 = vmax.f32 %v425, 0.0
    %v468 = vmax.f32 %v430, 0.0
    %v469 = vmax.f32 %v433, 0.0
    %v470 = vmax.f32 %v438, 0.0
    %v471 = vmax.f32 %v441, 0.0
    %v472 = vmax.f32 %v446, 0.0
    %v473 = vmax.f32 %v449, 0.0
    %v474 = vmax.f32 %v454, 0.0
    %v475 = vmax.f32 %v457, 0.0
    %v476 = vpack.c.bf16 %v461, %v460
    %v477 = vpack.c.bf16 %v463, %v462
    %v478 = vpack.c.bf16 %v465, %v464
    %v479 = vpack.c.bf16 %v467, %v466
    %v480 = vpack.c.bf16 %v469, %v468
    %v481 = vpack.c.bf16 %v471, %v470
    %v482 = vpack.c.bf16 %v473, %v472
    %v483 = vpack.c.bf16 %v475, %v474
    %v484 = vld [vmem:[%s3] sm:$0xf]
    %v485 = vld [vmem:[%s3 + $0x4] sm:$0xf]
    %v486 = vld [vmem:[%s3 + $0x8] sm:$0xf]
    %v487 = vld [vmem:[%s3 + $0xc] sm:$0xf]
    %v488 = vld [vmem:[%s3 + $0x10] sm:$0xf]
    %v489 = vld [vmem:[%s3 + $0x14] sm:$0xf]
    %v490 = vld [vmem:[%s3 + $0x18] sm:$0xf]
    %v491 = vld [vmem:[%s3 + $0x1c] sm:$0xf]
    %v492 = vld [vmem:[#allocation10] sm:$0x1]
    %v494 = vlaneseq
    %v495 = vshrl.u32 %v494, 7
    %v496 = vsub.s32 0, %v495
    %v497 = vrot.slane %v492, %v496
    %v507 = vunpack.c.l.b16 %v484
    %v508 = vunpack.c.l.b16 %v485
    %v509 = vunpack.c.l.b16 %v486
    %v510 = vunpack.c.l.b16 %v487
    %v511 = vunpack.c.l.b16 %v488
    %v512 = vunpack.c.l.b16 %v489
    %v513 = vunpack.c.l.b16 %v490
    %v514 = vunpack.c.l.b16 %v491
    %v515 = vpack.c.b16 %v508, %v507
    %v516 = vpack.c.b16 %v510, %v509
    %v517 = vpack.c.b16 %v512, %v511
    %v518 = vpack.c.b16 %v514, %v513
    %v524 = vsel %vm338, %v476, 0
    %v527 = vsel %vm338, %v477, 0
    %v530 = vsel %vm338, %v478, 0
    %v533 = vsel %vm338, %v479, 0
    %v536 = vsel %vm338, %v480, 0
    %v539 = vsel %vm338, %v481, 0
    %v542 = vsel %vm338, %v482, 0
    %v545 = vsel %vm338, %v483, 0
    %547 = vmatprep.subr.bf16.mxu0 0
    %548 = vmatpush1.bf16.msra.mxu0 %v515
    %549 = vmatprep.subr.bf16.mxu0 0
    %550 = vmatpush1.bf16.msra.mxu0 %v516
    %551 = vmatprep.subr.bf16.mxu0 0
    %552 = vmatpush1.bf16.msra.mxu0 %v517
    %553 = vmatprep.subr.bf16.mxu0 0
    %554 = vmatpush1.bf16.msra.mxu0 %v518
    %555 = vmatprep.subr.bf16.mxu0 0
    %556 = vmatpush1.bf16.msra.mxu0 0
    %557 = vmatprep.subr.bf16.mxu0 0
    %558 = vmatpush1.bf16.msra.mxu0 0
    %559 = vmatprep.subr.bf16.mxu0 0
    %560 = vmatpush1.bf16.msra.mxu0 0
    %561 = vmatprep.subr.bf16.mxu0 0
    %562 = vmatpush1.bf16.msra.mxu0 0
    %563 = vmatprep.subr.bf16.mxu0 0
    %564 = vmatpush1.bf16.msra.mxu0 0
    %565 = vmatprep.subr.bf16.mxu0 0
    %566 = vmatpush1.bf16.msra.mxu0 0
    %567 = vmatprep.subr.bf16.mxu0 0
    %568 = vmatpush1.bf16.msra.mxu0 0
    %569 = vmatprep.subr.bf16.mxu0 0
    %570 = vmatpush1.bf16.msra.mxu0 0
    %571 = vmatprep.subr.bf16.mxu0 0
    %572 = vmatpush1.bf16.msra.mxu0 0
    %573 = vmatprep.subr.bf16.mxu0 0
    %574 = vmatpush1.bf16.msra.mxu0 0
    %575 = vmatprep.subr.bf16.mxu0 0
    %576 = vmatpush1.bf16.msra.mxu0 0
    %577 = vmatprep.subr.bf16.mxu0 0
    %578 = vmatpush1.bf16.msra.mxu0 0
    %579 = vmatprep.mubr.bf16.mxu0 0
    %580 = vmatmul.mubr.bf16.gmra.mrb[0].mxu0 %v524
    %v581 = vpop.f32.mrb[0].mxu0
    %v582 = vadd.f32 %v497, %v581
    %v583 = vpop.f32.mrb[0].mxu0
    %v584 = vpop.f32.mrb[0].mxu0
    %v585 = vadd.f32 %v497, %v584
    %v586 = vpop.f32.mrb[0].mxu0
    %587 = vmatprep.mubr.bf16.mxu0 0
    %588 = vmatmul.mubr.bf16.gmra.mrb[0].mxu0 %v527
    %v589 = vpop.f32.mrb[0].mxu0
    %v590 = vadd.f32 %v497, %v589
    %v591 = vpop.f32.mrb[0].mxu0
    %v592 = vpop.f32.mrb[0].mxu0
    %v593 = vadd.f32 %v497, %v592
    %v594 = vpop.f32.mrb[0].mxu0
    %595 = vmatprep.mubr.bf16.mxu0 0
    %596 = vmatmul.mubr.bf16.gmra.mrb[0].mxu0 %v530
    %v597 = vpop.f32.mrb[0].mxu0
    %v598 = vadd.f32 %v497, %v597
    %v599 = vpop.f32.mrb[0].mxu0
    %v600 = vpop.f32.mrb[0].mxu0
    %v601 = vadd.f32 %v497, %v600
    %v602 = vpop.f32.mrb[0].mxu0
    %603 = vmatprep.mubr.bf16.mxu0 0
    %604 = vmatmul.mubr.bf16.gmra.mrb[0].mxu0 %v533
    %v605 = vpop.f32.mrb[0].mxu0
    %v606 = vadd.f32 %v497, %v605
    %v607 = vpop.f32.mrb[0].mxu0
    %v608 = vpop.f32.mrb[0].mxu0
    %v609 = vadd.f32 %v497, %v608
    %v610 = vpop.f32.mrb[0].mxu0
    %611 = vmatprep.mubr.bf16.mxu0 0
    %612 = vmatmul.mubr.bf16.gmra.mrb[0].mxu0 %v536
    %v613 = vpop.f32.mrb[0].mxu0
    %v614 = vadd.f32 %v497, %v613
    %v615 = vpop.f32.mrb[0].mxu0
    %v616 = vpop.f32.mrb[0].mxu0
    %v617 = vadd.f32 %v497, %v616
    %v618 = vpop.f32.mrb[0].mxu0
    %619 = vmatprep.mubr.bf16.mxu0 0
    %620 = vmatmul.mubr.bf16.gmra.mrb[0].mxu0 %v539
    %v621 = vpop.f32.mrb[0].mxu0
    %v622 = vadd.f32 %v497, %v621
    %v623 = vpop.f32.mrb[0].mxu0
    %v624 = vpop.f32.mrb[0].mxu0
    %v625 = vadd.f32 %v497, %v624
    %v626 = vpop.f32.mrb[0].mxu0
    %627 = vmatprep.mubr.bf16.mxu0 0
    %628 = vmatmul.mubr.bf16.gmra.mrb[0].mxu0 %v542
    %v629 = vpop.f32.mrb[0].mxu0
    %v630 = vadd.f32 %v497, %v629
    %v631 = vpop.f32.mrb[0].mxu0
    %v632 = vpop.f32.mrb[0].mxu0
    %v633 = vadd.f32 %v497, %v632
    %v634 = vpop.f32.mrb[0].mxu0
    %635 = vmatprep.mubr.bf16.mxu0 0
    %636 = vmatmul.mubr.bf16.gmra.mrb[0].mxu0 %v545
    %v637 = vpop.f32.mrb[0].mxu0
    %v638 = vadd.f32 %v497, %v637
    %v639 = vpop.f32.mrb[0].mxu0
    %v640 = vpop.f32.mrb[0].mxu0
    %v641 = vadd.f32 %v497, %v640
    %v642 = vpop.f32.mrb[0].mxu0
    %643 = vdwg.mxu0
    %v644 = vmax.f32 %v582, 0.0
    %v645 = vmax.f32 %v585, 0.0
    %v646 = vmax.f32 %v590, 0.0
    %v647 = vmax.f32 %v593, 0.0
    %v648 = vmax.f32 %v598, 0.0
    %v649 = vmax.f32 %v601, 0.0
    %v650 = vmax.f32 %v606, 0.0
    %v651 = vmax.f32 %v609, 0.0
    %v652 = vmax.f32 %v614, 0.0
    %v653 = vmax.f32 %v617, 0.0
    %v654 = vmax.f32 %v622, 0.0
    %v655 = vmax.f32 %v625, 0.0
    %v656 = vmax.f32 %v630, 0.0
    %v657 = vmax.f32 %v633, 0.0
    %v658 = vmax.f32 %v638, 0.0
    %v659 = vmax.f32 %v641, 0.0
    %v660 = vpack.c.bf16 %v645, %v644
    %v661 = vpack.c.bf16 %v647, %v646
    %v662 = vpack.c.bf16 %v649, %v648
    %v663 = vpack.c.bf16 %v651, %v650
    %v664 = vpack.c.bf16 %v653, %v652
    %v665 = vpack.c.bf16 %v655, %v654
    %v666 = vpack.c.bf16 %v657, %v656
    %v667 = vpack.c.bf16 %v659, %v658
    %v668 = vld [vmem:[#allocation2] sm:$0xf]
    %v669 = vld [vmem:[#allocation2 + $0x4] sm:$0xf]
    %v670 = vld [vmem:[#allocation2 + $0x8] sm:$0xf]
    %v671 = vld [vmem:[#allocation2 + $0xc] sm:$0xf]
    %v672 = vld [vmem:[#allocation2 + $0x10] sm:$0xf]
    %v673 = vld [vmem:[#allocation2 + $0x14] sm:$0xf]
    %v674 = vld [vmem:[#allocation2 + $0x18] sm:$0xf]
    %v675 = vld [vmem:[#allocation2 + $0x1c] sm:$0xf]
    %v676 = vld [vmem:[#allocation11] sm:$0x1]
    %v678 = vlaneseq
    %v679 = vshrl.u32 %v678, 7
    %v680 = vsub.s32 0, %v679
    %v681 = vrot.slane %v676, %v680
    %v691 = vunpack.c.l.b16 %v668
    %v692 = vunpack.c.l.b16 %v669
    %v693 = vunpack.c.l.b16 %v670
    %v694 = vunpack.c.l.b16 %v671
    %v695 = vunpack.c.l.b16 %v672
    %v696 = vunpack.c.l.b16 %v673
    %v697 = vunpack.c.l.b16 %v674
    %v698 = vunpack.c.l.b16 %v675
    %v699 = vpack.c.b16 %v692, %v691
    %v700 = vpack.c.b16 %v694, %v693
    %v701 = vpack.c.b16 %v696, %v695
    %v702 = vpack.c.b16 %v698, %v697
    %v708 = vsel %vm338, %v660, 0
    %v711 = vsel %vm338, %v661, 0
    %v714 = vsel %vm338, %v662, 0
    %v717 = vsel %vm338, %v663, 0
    %v720 = vsel %vm338, %v664, 0
    %v723 = vsel %vm338, %v665, 0
    %v726 = vsel %vm338, %v666, 0
    %v729 = vsel %vm338, %v667, 0
    %731 = vmatprep.subr.bf16.mxu0 0
    %732 = vmatpush1.bf16.msra.mxu0 %v699
    %733 = vmatprep.subr.bf16.mxu0 0
    %734 = vmatpush1.bf16.msra.mxu0 %v700
    %735 = vmatprep.subr.bf16.mxu0 0
    %736 = vmatpush1.bf16.msra.mxu0 %v701
    %737 = vmatprep.subr.bf16.mxu0 0
    %738 = vmatpush1.bf16.msra.mxu0 %v702
    %739 = vmatprep.subr.bf16.mxu0 0
    %740 = vmatpush1.bf16.msra.mxu0 0
    %741 = vmatprep.subr.bf16.mxu0 0
    %742 = vmatpush1.bf16.msra.mxu0 0
    %743 = vmatprep.subr.bf16.mxu0 0
    %744 = vmatpush1.bf16.msra.mxu0 0
    %745 = vmatprep.subr.bf16.mxu0 0
    %746 = vmatpush1.bf16.msra.mxu0 0
    %747 = vmatprep.subr.bf16.mxu0 0
    %748 = vmatpush1.bf16.msra.mxu0 0
    %749 = vmatprep.subr.bf16.mxu0 0
    %750 = vmatpush1.bf16.msra.mxu0 0
    %751 = vmatprep.subr.bf16.mxu0 0
    %752 = vmatpush1.bf16.msra.mxu0 0
    %753 = vmatprep.subr.bf16.mxu0 0
    %754 = vmatpush1.bf16.msra.mxu0 0
    %755 = vmatprep.subr.bf16.mxu0 0
    %756 = vmatpush1.bf16.msra.mxu0 0
    %757 = vmatprep.subr.bf16.mxu0 0
    %758 = vmatpush1.bf16.msra.mxu0 0
    %759 = vmatprep.subr.bf16.mxu0 0
    %760 = vmatpush1.bf16.msra.mxu0 0
    %761 = vmatprep.subr.bf16.mxu0 0
    %762 = vmatpush1.bf16.msra.mxu0 0
    %763 = vmatprep.mubr.bf16.mxu0 0
    %764 = vmatmul.mubr.bf16.gmra.mrb[0].mxu0 %v708
    %v765 = vpop.f32.mrb[0].mxu0
    %v766 = vadd.f32 %v681, %v765
    %v767 = vpop.f32.mrb[0].mxu0
    %v768 = vpop.f32.mrb[0].mxu0
    %v769 = vadd.f32 %v681, %v768
    %v770 = vpop.f32.mrb[0].mxu0
    %771 = vmatprep.mubr.bf16.mxu0 0
    %772 = vmatmul.mubr.bf16.gmra.mrb[0].mxu0 %v711
    %v773 = vpop.f32.mrb[0].mxu0
    %v774 = vadd.f32 %v681, %v773
    %v775 = vpop.f32.mrb[0].mxu0
    %v776 = vpop.f32.mrb[0].mxu0
    %v777 = vadd.f32 %v681, %v776
    %v778 = vpop.f32.mrb[0].mxu0
    %779 = vmatprep.mubr.bf16.mxu0 0
    %780 = vmatmul.mubr.bf16.gmra.mrb[0].mxu0 %v714
    %v781 = vpop.f32.mrb[0].mxu0
    %v782 = vadd.f32 %v681, %v781
    %v783 = vpop.f32.mrb[0].mxu0
    %v784 = vpop.f32.mrb[0].mxu0
    %v785 = vadd.f32 %v681, %v784
    %v786 = vpop.f32.mrb[0].mxu0
    %787 = vmatprep.mubr.bf16.mxu0 0
    %788 = vmatmul.mubr.bf16.gmra.mrb[0].mxu0 %v717
    %v789 = vpop.f32.mrb[0].mxu0
    %v790 = vadd.f32 %v681, %v789
    %v791 = vpop.f32.mrb[0].mxu0
    %v792 = vpop.f32.mrb[0].mxu0
    %v793 = vadd.f32 %v681, %v792
    %v794 = vpop.f32.mrb[0].mxu0
    %795 = vmatprep.mubr.bf16.mxu0 0
    %796 = vmatmul.mubr.bf16.gmra.mrb[0].mxu0 %v720
    %v797 = vpop.f32.mrb[0].mxu0
    %v798 = vadd.f32 %v681, %v797
    %v799 = vpop.f32.mrb[0].mxu0
    %v800 = vpop.f32.mrb[0].mxu0
    %v801 = vadd.f32 %v681, %v800
    %v802 = vpop.f32.mrb[0].mxu0
    %803 = vmatprep.mubr.bf16.mxu0 0
    %804 = vmatmul.mubr.bf16.gmra.mrb[0].mxu0 %v723
    %v805 = vpop.f32.mrb[0].mxu0
    %v806 = vadd.f32 %v681, %v805
    %v807 = vpop.f32.mrb[0].mxu0
    %v808 = vpop.f32.mrb[0].mxu0
    %v809 = vadd.f32 %v681, %v808
    %v810 = vpop.f32.mrb[0].mxu0
    %811 = vmatprep.mubr.bf16.mxu0 0
    %812 = vmatmul.mubr.bf16.gmra.mrb[0].mxu0 %v726
    %v813 = vpop.f32.mrb[0].mxu0
    %v814 = vadd.f32 %v681, %v813
    %v815 = vpop.f32.mrb[0].mxu0
    %v816 = vpop.f32.mrb[0].mxu0
    %v817 = vadd.f32 %v681, %v816
    %v818 = vpop.f32.mrb[0].mxu0
    %819 = vmatprep.mubr.bf16.mxu0 0
    %820 = vmatmul.mubr.bf16.gmra.mrb[0].mxu0 %v729
    %v821 = vpop.f32.mrb[0].mxu0
    %v822 = vadd.f32 %v681, %v821
    %v823 = vpop.f32.mrb[0].mxu0
    %v824 = vpop.f32.mrb[0].mxu0
    %v825 = vadd.f32 %v681, %v824
    %v826 = vpop.f32.mrb[0].mxu0
    %827 = vdwg.mxu0
    %v828 = vmax.f32 %v766, 0.0
    %v829 = vmax.f32 %v769, 0.0
    %v830 = vmax.f32 %v774, 0.0
    %v831 = vmax.f32 %v777, 0.0
    %v832 = vmax.f32 %v782, 0.0
    %v833 = vmax.f32 %v785, 0.0
    %v834 = vmax.f32 %v790, 0.0
    %v835 = vmax.f32 %v793, 0.0
    %v836 = vmax.f32 %v798, 0.0
    %v837 = vmax.f32 %v801, 0.0
    %v838 = vmax.f32 %v806, 0.0
    %v839 = vmax.f32 %v809, 0.0
    %v840 = vmax.f32 %v814, 0.0
    %v841 = vmax.f32 %v817, 0.0
    %v842 = vmax.f32 %v822, 0.0
    %v843 = vmax.f32 %v825, 0.0
    %v844 = vpack.c.bf16 %v829, %v828
    %v845 = vpack.c.bf16 %v831, %v830
    %v846 = vpack.c.bf16 %v833, %v832
    %v847 = vpack.c.bf16 %v835, %v834
    %v848 = vpack.c.bf16 %v837, %v836
    %v849 = vpack.c.bf16 %v839, %v838
    %v850 = vpack.c.bf16 %v841, %v840
    %v851 = vpack.c.bf16 %v843, %v842
    %v852 = vld [vmem:[#allocation5] sm:$0xff]
    %v853 = vld [vmem:[#allocation5 + $0x8] sm:$0xff]
    %v854 = vld [vmem:[#allocation5 + $0x10] sm:$0xff]
    %v855 = vld [vmem:[#allocation5 + $0x18] sm:$0xff]
    %v856 = vld [vmem:[#allocation5 + $0x20] sm:$0xff]
    %v857 = vld [vmem:[#allocation5 + $0x28] sm:$0xff]
    %v858 = vld [vmem:[#allocation5 + $0x30] sm:$0xff]
    %v859 = vld [vmem:[#allocation5 + $0x38] sm:$0xff]
    %v860 = vld [vmem:[#allocation5 + $0x40] sm:$0xff]
    %v861 = vld [vmem:[#allocation5 + $0x48] sm:$0xff]
    %v862 = vld [vmem:[#allocation5 + $0x50] sm:$0xff]
    %v863 = vld [vmem:[#allocation5 + $0x58] sm:$0xff]
    %v864 = vld [vmem:[#allocation5 + $0x60] sm:$0xff]
    %v865 = vld [vmem:[#allocation5 + $0x68] sm:$0xff]
    %v866 = vld [vmem:[#allocation5 + $0x70] sm:$0xff]
    %v867 = vld [vmem:[#allocation5 + $0x78] sm:$0xff]
    %v868 = vld [vmem:[%s10] sm:$0x3]
    %v870 = vlaneseq
    %v871 = vshrl.u32 %v870, 7
    %v872 = vsub.s32 0, %v871
    %v873 = vrot.slane %v868, %v872
    %v874 = vlaneseq
    %v875 = vshrl.u32 %v874, 7
    %v876 = vsub.s32 1, %v875
    %v877 = vrot.slane %v868, %v876
    %v896 = vunpack.c.l.b16 %v852
    %v897 = vunpack.c.h.b16 %v852
    %v898 = vunpack.c.l.b16 %v853
    %v899 = vunpack.c.h.b16 %v853
    %v900 = vunpack.c.l.b16 %v854
    %v901 = vunpack.c.h.b16 %v854
    %v902 = vunpack.c.l.b16 %v855
    %v903 = vunpack.c.h.b16 %v855
    %v904 = vunpack.c.l.b16 %v856
    %v905 = vunpack.c.h.b16 %v856
    %v906 = vunpack.c.l.b16 %v857
    %v907 = vunpack.c.h.b16 %v857
    %v908 = vunpack.c.l.b16 %v858
    %v909 = vunpack.c.h.b16 %v858
    %v910 = vunpack.c.l.b16 %v859
    %v911 = vunpack.c.h.b16 %v859
    %v912 = vunpack.c.l.b16 %v860
    %v913 = vunpack.c.h.b16 %v860
    %v914 = vunpack.c.l.b16 %v861
    %v915 = vunpack.c.h.b16 %v861
    %v916 = vunpack.c.l.b16 %v862
    %v917 = vunpack.c.h.b16 %v862
    %v918 = vunpack.c.l.b16 %v863
    %v919 = vunpack.c.h.b16 %v863
    %v920 = vunpack.c.l.b16 %v864
    %v921 = vunpack.c.h.b16 %v864
    %v922 = vunpack.c.l.b16 %v865
    %v923 = vunpack.c.h.b16 %v865
    %v924 = vunpack.c.l.b16 %v866
    %v925 = vunpack.c.h.b16 %v866
    %v926 = vunpack.c.l.b16 %v867
    %v927 = vunpack.c.h.b16 %v867
    %v928 = vpack.c.b16 %v898, %v896
    %v929 = vpack.c.b16 %v899, %v897
    %v930 = vpack.c.b16 %v902, %v900
    %v931 = vpack.c.b16 %v903, %v901
    %v932 = vpack.c.b16 %v906, %v904
    %v933 = vpack.c.b16 %v907, %v905
    %v934 = vpack.c.b16 %v910, %v908
    %v935 = vpack.c.b16 %v911, %v909
    %v936 = vpack.c.b16 %v914, %v912
    %v937 = vpack.c.b16 %v915, %v913
    %v938 = vpack.c.b16 %v918, %v916
    %v939 = vpack.c.b16 %v919, %v917
    %v940 = vpack.c.b16 %v922, %v920
    %v941 = vpack.c.b16 %v923, %v921
    %v942 = vpack.c.b16 %v926, %v924
    %v943 = vpack.c.b16 %v927, %v925
    %960 = vmatprep.subr.bf16.mxu0 %v929
    %961 = vmatpush1.bf16.msra.mxu0 %v928
    %962 = vmatprep.subr.bf16.mxu0 %v931
    %963 = vmatpush1.bf16.msra.mxu0 %v930
    %964 = vmatprep.subr.bf16.mxu0 %v933
    %965 = vmatpush1.bf16.msra.mxu0 %v932
    %966 = vmatprep.subr.bf16.mxu0 %v935
    %967 = vmatpush1.bf16.msra.mxu0 %v934
    %968 = vmatprep.subr.bf16.mxu0 %v937
    %969 = vmatpush1.bf16.msra.mxu0 %v936
    %970 = vmatprep.subr.bf16.mxu0 %v939
    %971 = vmatpush1.bf16.msra.mxu0 %v938
    %972 = vmatprep.subr.bf16.mxu0 %v941
    %973 = vmatpush1.bf16.msra.mxu0 %v940
    %974 = vmatprep.subr.bf16.mxu0 %v943
    %975 = vmatpush1.bf16.msra.mxu0 %v942
    %976 = vmatprep.subr.bf16.mxu0 0
    %977 = vmatpush1.bf16.msra.mxu0 0
    %978 = vmatprep.subr.bf16.mxu0 0
    %979 = vmatpush1.bf16.msra.mxu0 0
    %980 = vmatprep.subr.bf16.mxu0 0
    %981 = vmatpush1.bf16.msra.mxu0 0
    %982 = vmatprep.subr.bf16.mxu0 0
    %983 = vmatpush1.bf16.msra.mxu0 0
    %984 = vmatprep.subr.bf16.mxu0 0
    %985 = vmatpush1.bf16.msra.mxu0 0
    %986 = vmatprep.subr.bf16.mxu0 0
    %987 = vmatpush1.bf16.msra.mxu0 0
    %988 = vmatprep.subr.bf16.mxu0 0
    %989 = vmatpush1.bf16.msra.mxu0 0
    %990 = vmatprep.subr.bf16.mxu0 0
    %991 = vmatpush1.bf16.msra.mxu0 0
    %992 = vmatprep.mubr.bf16.mxu0 0
    %993 = vmatmul.mubr.bf16.gmra.mrb[0].mxu0 %v844
    %v994 = vpop.f32.mrb[0].mxu0
    %v995 = vadd.f32 %v873, %v994
    %v996 = vpop.f32.mrb[0].mxu0
    %v997 = vadd.f32 %v877, %v996
    %v998 = vpop.f32.mrb[0].mxu0
    %v999 = vadd.f32 %v873, %v998
    %v1000 = vpop.f32.mrb[0].mxu0
    %v1001 = vadd.f32 %v877, %v1000
    %1002 = vmatprep.mubr.bf16.mxu0 0
    %1003 = vmatmul.mubr.bf16.gmra.mrb[0].mxu0 %v845
    %v1004 = vpop.f32.mrb[0].mxu0
    %v1005 = vadd.f32 %v873, %v1004
    %v1006 = vpop.f32.mrb[0].mxu0
    %v1007 = vadd.f32 %v877, %v1006
    %v1008 = vpop.f32.mrb[0].mxu0
    %v1009 = vadd.f32 %v873, %v1008
    %v1010 = vpop.f32.mrb[0].mxu0
    %v1011 = vadd.f32 %v877, %v1010
    %1012 = vmatprep.mubr.bf16.mxu0 0
    %1013 = vmatmul.mubr.bf16.gmra.mrb[0].mxu0 %v846
    %v1014 = vpop.f32.mrb[0].mxu0
    %v1015 = vadd.f32 %v873, %v1014
    %v1016 = vpop.f32.mrb[0].mxu0
    %v1017 = vadd.f32 %v877, %v1016
    %v1018 = vpop.f32.mrb[0].mxu0
    %v1019 = vadd.f32 %v873, %v1018
    %v1020 = vpop.f32.mrb[0].mxu0
    %v1021 = vadd.f32 %v877, %v1020
    %1022 = vmatprep.mubr.bf16.mxu0 0
    %1023 = vmatmul.mubr.bf16.gmra.mrb[0].mxu0 %v847
    %v1024 = vpop.f32.mrb[0].mxu0
    %v1025 = vadd.f32 %v873, %v1024
    %v1026 = vpop.f32.mrb[0].mxu0
    %v1027 = vadd.f32 %v877, %v1026
    %v1028 = vpop.f32.mrb[0].mxu0
    %v1029 = vadd.f32 %v873, %v1028
    %v1030 = vpop.f32.mrb[0].mxu0
    %v1031 = vadd.f32 %v877, %v1030
    %1032 = vmatprep.mubr.bf16.mxu0 0
    %1033 = vmatmul.mubr.bf16.gmra.mrb[0].mxu0 %v848
    %v1034 = vpop.f32.mrb[0].mxu0
    %v1035 = vadd.f32 %v873, %v1034
    %v1036 = vpop.f32.mrb[0].mxu0
    %v1037 = vadd.f32 %v877, %v1036
    %v1038 = vpop.f32.mrb[0].mxu0
    %v1039 = vadd.f32 %v873, %v1038
    %v1040 = vpop.f32.mrb[0].mxu0
    %v1041 = vadd.f32 %v877, %v1040
    %1042 = vmatprep.mubr.bf16.mxu0 0
    %1043 = vmatmul.mubr.bf16.gmra.mrb[0].mxu0 %v849
    %v1044 = vpop.f32.mrb[0].mxu0
    %v1045 = vadd.f32 %v873, %v1044
    %v1046 = vpop.f32.mrb[0].mxu0
    %v1047 = vadd.f32 %v877, %v1046
    %v1048 = vpop.f32.mrb[0].mxu0
    %v1049 = vadd.f32 %v873, %v1048
    %v1050 = vpop.f32.mrb[0].mxu0
    %v1051 = vadd.f32 %v877, %v1050
    %1052 = vmatprep.mubr.bf16.mxu0 0
    %1053 = vmatmul.mubr.bf16.gmra.mrb[0].mxu0 %v850
    %v1054 = vpop.f32.mrb[0].mxu0
    %v1055 = vadd.f32 %v873, %v1054
    %v1056 = vpop.f32.mrb[0].mxu0
    %v1057 = vadd.f32 %v877, %v1056
    %v1058 = vpop.f32.mrb[0].mxu0
    %v1059 = vadd.f32 %v873, %v1058
    %v1060 = vpop.f32.mrb[0].mxu0
    %v1061 = vadd.f32 %v877, %v1060
    %1062 = vmatprep.mubr.bf16.mxu0 0
    %1063 = vmatmul.mubr.bf16.gmra.mrb[0].mxu0 %v851
    %v1064 = vpop.f32.mrb[0].mxu0
    %v1065 = vadd.f32 %v873, %v1064
    %v1066 = vpop.f32.mrb[0].mxu0
    %v1067 = vadd.f32 %v877, %v1066
    %v1068 = vpop.f32.mrb[0].mxu0
    %v1069 = vadd.f32 %v873, %v1068
    %v1070 = vpop.f32.mrb[0].mxu0
    %v1071 = vadd.f32 %v877, %v1070
    %1072 = vdwg.mxu0
    %v1073 = vmax.f32 %v995, 0.0
    %v1074 = vmax.f32 %v997, 0.0
    %v1075 = vmax.f32 %v999, 0.0
    %v1076 = vmax.f32 %v1001, 0.0
    %v1077 = vmax.f32 %v1005, 0.0
    %v1078 = vmax.f32 %v1007, 0.0
    %v1079 = vmax.f32 %v1009, 0.0
    %v1080 = vmax.f32 %v1011, 0.0
    %v1081 = vmax.f32 %v1015, 0.0
    %v1082 = vmax.f32 %v1017, 0.0
    %v1083 = vmax.f32 %v1019, 0.0
    %v1084 = vmax.f32 %v1021, 0.0
    %v1085 = vmax.f32 %v1025, 0.0
    %v1086 = vmax.f32 %v1027, 0.0
    %v1087 = vmax.f32 %v1029, 0.0
    %v1088 = vmax.f32 %v1031, 0.0
    %v1089 = vmax.f32 %v1035, 0.0
    %v1090 = vmax.f32 %v1037, 0.0
    %v1091 = vmax.f32 %v1039, 0.0
    %v1092 = vmax.f32 %v1041, 0.0
    %v1093 = vmax.f32 %v1045, 0.0
    %v1094 = vmax.f32 %v1047, 0.0
    %v1095 = vmax.f32 %v1049, 0.0
    %v1096 = vmax.f32 %v1051, 0.0
    %v1097 = vmax.f32 %v1055, 0.0
    %v1098 = vmax.f32 %v1057, 0.0
    %v1099 = vmax.f32 %v1059, 0.0
    %v1100 = vmax.f32 %v1061, 0.0
    %v1101 = vmax.f32 %v1065, 0.0
    %v1102 = vmax.f32 %v1067, 0.0
    %v1103 = vmax.f32 %v1069, 0.0
    %v1104 = vmax.f32 %v1071, 0.0
    %v1105 = vmax.f32 %v1073, %v1077
    %v1106 = vmax.f32 %v1075, %v1079
    %v1107 = vmax.f32 %v1105, %v1081
    %v1108 = vmax.f32 %v1106, %v1083
    %v1109 = vmax.f32 %v1107, %v1085
    %v1110 = vmax.f32 %v1108, %v1087
    %v1111 = vmax.f32 %v1109, %v1110
    %v1112 = vrot.slane %v1111, 4
    %v1113 = vmax.f32 %v1111, %v1112
    %v1114 = vrot.slane %v1113, 2
    %v1115 = vmax.f32 %v1113, %v1114
    %v1116 = vrot.slane %v1115, 1
    %v1117 = vmax.f32 %v1115, %v1116
    %v1118 = vmax.f32 %v1074, %v1078
    %v1119 = vmax.f32 %v1076, %v1080
    %v1120 = vmax.f32 %v1118, %v1082
    %v1121 = vmax.f32 %v1119, %v1084
    %v1122 = vmax.f32 %v1120, %v1086
    %v1123 = vmax.f32 %v1121, %v1088
    %v1124 = vmax.f32 %v1122, %v1123
    %v1125 = vrot.slane %v1124, 4
    %v1126 = vmax.f32 %v1124, %v1125
    %v1127 = vrot.slane %v1126, 2
    %v1128 = vmax.f32 %v1126, %v1127
    %v1129 = vrot.slane %v1128, 1
    %v1130 = vmax.f32 %v1128, %v1129
    %v1133 = vcombine.low %v1117, %v1130
    %v1135 = vunpack.c.l.s4 1966171168
    %v1136 = vunpack.c.0.s8 %v1135
    %v1137 = vlaneseq
    %v1138 = vshrl.u32 %v1137, 7
    %v1139 = vsub.s32 %v1136, %v1138
    %v1140 = vrot.slane %v1133, %v1139
    %v1142 = vunpack.c.l.s4 1966171168
    %v1143 = vunpack.c.0.s8 %v1142
    %v1144 = vlaneseq
    %v1145 = vshrl.u32 %v1144, 7
    %v1146 = vsub.s32 %v1143, %v1145
    %v1147 = vrot.slane %v1140, %v1146
    %v1149 = vlaneseq
    %vm1150 = vcmp.ge.s32.totalorder %v1149, 0
    %vm1151 = vcmp.lt.s32.totalorder %v1149, 256
    %vm1152 = vmand %vm1150, %vm1151
    %1153 = vst.msk [vmem:[#allocation13] ss:$2 sm:$0x3] %vm1152, %v1147
    %v1154 = vmax.f32 %v1089, %v1093
    %v1155 = vmax.f32 %v1091, %v1095
    %v1156 = vmax.f32 %v1154, %v1097
    %v1157 = vmax.f32 %v1155, %v1099
    %v1158 = vmax.f32 %v1156, %v1101
    %v1159 = vmax.f32 %v1157, %v1103
    %v1160 = vmax.f32 %v1158, %v1159
    %v1161 = vrot.slane %v1160, 4
    %v1162 = vmax.f32 %v1160, %v1161
    %v1163 = vrot.slane %v1162, 2
    %v1164 = vmax.f32 %v1162, %v1163
    %v1165 = vrot.slane %v1164, 1
    %v1166 = vmax.f32 %v1164, %v1165
    %v1167 = vmax.f32 %v1090, %v1094
    %v1168 = vmax.f32 %v1092, %v1096
    %v1169 = vmax.f32 %v1167, %v1098
    %v1170 = vmax.f32 %v1168, %v1100
    %v1171 = vmax.f32 %v1169, %v1102
    %v1172 = vmax.f32 %v1170, %v1104
    %v1173 = vmax.f32 %v1171, %v1172
    %v1174 = vrot.slane %v1173, 4
    %v1175 = vmax.f32 %v1173, %v1174
    %v1176 = vrot.slane %v1175, 2
    %v1177 = vmax.f32 %v1175, %v1176
    %v1178 = vrot.slane %v1177, 1
    %v1179 = vmax.f32 %v1177, %v1178
    %v1182 = vcombine.low %v1166, %v1179
    %v1184 = vunpack.c.l.s4 1966171168
    %v1185 = vunpack.c.0.s8 %v1184
    %v1186 = vlaneseq
    %v1187 = vshrl.u32 %v1186, 7
    %v1188 = vsub.s32 %v1185, %v1187
    %v1189 = vrot.slane %v1182, %v1188
    %v1191 = vunpack.c.l.s4 1966171168
    %v1192 = vunpack.c.0.s8 %v1191
    %v1193 = vlaneseq
    %v1194 = vshrl.u32 %v1193, 7
    %v1195 = vsub.s32 %v1192, %v1194
    %v1196 = vrot.slane %v1189, %v1195
    %s1198 = scalar_lea.vmem [#allocation13], 1
    %1199 = vst.msk [vmem:[%s1198] ss:$2 sm:$0x3] %vm1152, %v1196
    // Predicated region
    $region70: #{pointnet_encoder_forward.1} parent=1 // pred_check
      _
    $region71: #{pointnet_encoder_forward.1} parent=1 // pred_check_branch
      %1201 = sbr.rel (0) target = $region73
    $region72: #{pointnet_encoder_forward.1} parent=1 // pred_region
      %s1203 = ssub.s32 64, 64
      %1204 = vsyncadd [#allocation4], %s1203
      %s1206 = sshll.u32 [#allocation13], 4
      %s1207 = int_to_ptr.vmem [resolvable:$true] %s1206
      %1209 = dma.vmem_to_hbm [thread:$0]  %s1207, 64, %s11, [#allocation4]
    $region73: #{pointnet_encoder_forward.1} parent=1 // pred_fallthru
      _
    // Predicated region
    $region74: #{pointnet_encoder_forward.1} parent=1 // pred_check
      _
    $region75: #{pointnet_encoder_forward.1} parent=1 // pred_check_branch
      %1211 = sbr.rel (0) target = $region77
    $region76: #{pointnet_encoder_forward.1} parent=1 // pred_region
      %1212 = dma.done [#allocation4], 64
    $region77: #{pointnet_encoder_forward.1} parent=1 // pred_fallthru
      _
    %1213 = vsyncpa [#allocation3], 1
    %1214 = vsyncpa [#allocation6], 1
    %1215 = vsyncpa [#allocation9], 1
    %1216 = vsyncpa [#allocation12], 1
    %1217 = vsyncpa [#allocation4], 1

</llo_original>
